<compile_context>
chip_gen: v7x
topology: tpu7x:2x2x1
jax: 0.10.0
libtpu: 0.0.40
codegen_flags: <defaults>
</compile_context>

<pallas_src>
import jax
import jax.numpy as jnp
from jax.experimental import pallas as pl
from jax.experimental.pallas import tpu as pltpu


def _add_kernel(a_ref, b_ref, o_ref):
    # whole-tile elementwise add on the VPU
    o_ref[...] = a_ref[...] + b_ref[...]


# 3 arrays x 2 pipeline buffers x 2 MiB = 12 MiB < v5e's 16 MiB scoped VMEM
_MAX_BLOCK_BYTES = 2 * 1024 * 1024
# fallback 1-D chunk: multiple of 8*128 elements, 256 KiB at f32
_FALLBACK_CHUNK = 64 * 1024


def _pick_cols(total: int):
    # widest lane-dense column count (multiple of 128) that divides the element count
    for cols in (1024, 512, 256, 128):
        if total % cols == 0:
            return cols
    return None


def _cost(total: int, itemsize: int) -> pl.CostEstimate:
    return pl.CostEstimate(
        flops=total, transcendentals=0, bytes_accessed=3 * total * itemsize
    )


def _residual_add(x588: jax.Array, x574: jax.Array) -> jax.Array:
    assert x588.shape == x574.shape and x588.dtype == x574.dtype
    orig_shape = x588.shape
    dtype = x588.dtype
    itemsize = jnp.dtype(dtype).itemsize
    total = 1
    for d in orig_shape:
        total *= d

    cols = _pick_cols(total)
    if cols is None:
        # Hardened fallback (not hit for this module): tile the flattened
        # vector in bounded lane-dense chunks instead of assuming it fits VMEM.
        a1 = x588.reshape(total)
        b1 = x574.reshape(total)
        if total <= _FALLBACK_CHUNK:
            out1 = pl.pallas_call(
                _add_kernel,
                out_shape=jax.ShapeDtypeStruct((total,), dtype),
                in_specs=[pl.BlockSpec(memory_space=pltpu.MemorySpace.VMEM)] * 2,
                out_specs=pl.BlockSpec(memory_space=pltpu.MemorySpace.VMEM),
                input_output_aliases={0: 0},
                cost_estimate=_cost(total, itemsize),
            )(a1, b1)
        else:
            out1 = pl.pallas_call(
                _add_kernel,
                out_shape=jax.ShapeDtypeStruct((total,), dtype),
                grid=(pl.cdiv(total, _FALLBACK_CHUNK),),
                in_specs=[pl.BlockSpec((_FALLBACK_CHUNK,), lambda i: (i,))] * 2,
                out_specs=pl.BlockSpec((_FALLBACK_CHUNK,), lambda i: (i,)),
                input_output_aliases={0: 0},
                compiler_params=pltpu.CompilerParams(
                    dimension_semantics=("parallel",)
                ),
                cost_estimate=_cost(total, itemsize),
            )(a1, b1)
        return out1.reshape(orig_shape)

    rows = total // cols
    a2 = x588.reshape(rows, cols)
    b2 = x574.reshape(rows, cols)

    # largest multiple-of-8 row tile whose block stays under the byte budget
    block_rows_cap = max(8, (_MAX_BLOCK_BYTES // (cols * itemsize)) // 8 * 8)

    if rows <= block_rows_cap:
        # Path taken for (147, 128): single whole-array block resident in VMEM,
        # no grid / no pipeline prologue — cheapest standalone form of this op.
        out2 = pl.pallas_call(
            _add_kernel,
            out_shape=jax.ShapeDtypeStruct((rows, cols), dtype),
            in_specs=[pl.BlockSpec(memory_space=pltpu.MemorySpace.VMEM)] * 2,
            out_specs=pl.BlockSpec(memory_space=pltpu.MemorySpace.VMEM),
            input_output_aliases={0: 0},
            cost_estimate=_cost(total, itemsize),
        )(a2, b2)
    else:
        block_rows = block_rows_cap
        n_blocks = pl.cdiv(rows, block_rows)
        # v7x: prefer an even program count so both TensorCores get work.
        if n_blocks > 1 and n_blocks % 2 == 1:
            n_blocks += 1
            block_rows = max(8, ((rows + n_blocks - 1) // n_blocks + 7) // 8 * 8)
            n_blocks = pl.cdiv(rows, block_rows)

        out2 = pl.pallas_call(
            _add_kernel,
            out_shape=jax.ShapeDtypeStruct((rows, cols), dtype),
            grid=(n_blocks,),
            in_specs=[
                pl.BlockSpec((block_rows, cols), lambda i: (i, 0)),
                pl.BlockSpec((block_rows, cols), lambda i: (i, 0)),
            ],
            out_specs=pl.BlockSpec((block_rows, cols), lambda i: (i, 0)),
            input_output_aliases={0: 0},
            compiler_params=pltpu.CompilerParams(
                dimension_semantics=("parallel",)
            ),
            cost_estimate=_cost(total, itemsize),
        )(a2, b2)

    return out2.reshape(orig_shape)


# Donate x588 so the pallas-level aliasing is realized end-to-end (no defensive
# copy).  Callers must not reuse x588 after this call.
residual_add = jax.jit(_residual_add, donate_argnums=(0,))


if __name__ == "__main__":
    key = jax.random.PRNGKey(0)
    k1, k2 = jax.random.split(key)
    # shapes from the module's forward: [1, 384, 7, 7]
    x588 = jax.random.normal(k1, (1, 384, 7, 7), dtype=jnp.float32)
    x574 = jax.random.normal(k2, (1, 384, 7, 7), dtype=jnp.float32)

    # pure-JAX reference (computed BEFORE the call: x588 is donated/aliased)
    ref = x588 + x574
    ref = jax.block_until_ready(ref)

    out = residual_add(x588, x574)
    out = jax.block_until_ready(out)

    assert out.shape == (1, 384, 7, 7)
    assert out.dtype == jnp.float32
    assert jnp.allclose(out, ref, atol=1e-6, rtol=1e-6)

    print("KERNEL_OK")
</pallas_src>

<mosaic_0001>
module attributes {stable_mosaic.version = 11 : i64} {
  func.func @_add_kernel(%arg0: memref<147x128xf32, #tpu.memory_space<vmem>>, %arg1: memref<147x128xf32, #tpu.memory_space<vmem>>, %arg2: memref<147x128xf32, #tpu.memory_space<vmem>>) attributes {dimension_semantics = [], scalar_prefetch = 0 : i64, scratch_operands = 0 : i64, tpu.core_type = #tpu.core_type<tc>} {
    %c0 = arith.constant 0 : index
    %c0_0 = arith.constant 0 : index
    %0 = vector.load %arg0[%c0, %c0_0] : memref<147x128xf32, #tpu.memory_space<vmem>>, vector<147x128xf32>
    %c0_1 = arith.constant 0 : index
    %c0_2 = arith.constant 0 : index
    %1 = vector.load %arg1[%c0_1, %c0_2] : memref<147x128xf32, #tpu.memory_space<vmem>>, vector<147x128xf32>
    %2 = arith.addf %0, %1 : vector<147x128xf32>
    %c0_3 = arith.constant 0 : index
    %c0_4 = arith.constant 0 : index
    %3 = vector.load %arg2[%c0_3, %c0_4] : memref<147x128xf32, #tpu.memory_space<vmem>>, vector<147x128xf32>
    tpu.vector_store %arg2[%c0_3, %c0_4], %2 {strides = array<i32>} : memref<147x128xf32, #tpu.memory_space<vmem>>, vector<147x128xf32>,
    return
  }
}

</mosaic_0001>

<llo_original>
// kernel: _residual_add.1
$region0: #{_residual_add.1}
  #allocation0 [shape = 'u32[]', space=smem, size = 0x4, offset = 0x4, fixed_abs, tag = 'smem constant byte address 0x4 - core index']
  #allocation1 [shape = 'u32[144,128]{1,0:T(1,128)}', space=vmem, size = 0x12000, scoped, tag = 'internal scratch']
  %s0 = inlined_call_operand.vmem [shape: f32[147,128], index: 0, kind: input, shape index: {}, may-alias: {0,2}]
  %s1 = inlined_call_operand.vmem [shape: f32[147,128], index: 1, kind: input, shape index: {}]
  %s2 = inlined_call_operand.vmem [shape: f32[147,128], index: 2, kind: output, shape index: {}, may-alias: {0,2}]
  %s3 = sld [smem:[#allocation0]]
  $region18: #{_residual_add.1} parent=0
    _
  %s5 = ssub.s32 1, %s3
  %s6 = scalar_select 0, %s5, %s3
  // Predicated region
  $region2: #{_residual_add.1} parent=0 // pred_check
    _
  $region3: #{_residual_add.1} parent=0 // pred_check_branch
    %8 = sbr.rel (0) target = $region5
  $region4: #{_residual_add.1} parent=0 // pred_region
    _
  $region5: #{_residual_add.1} parent=0 // pred_fallthru
    _
  // Predicated region
  $region6: #{_residual_add.1} parent=0 // pred_check
    _
  $region7: #{_residual_add.1} parent=0 // pred_check_branch
    %10 = sbr.rel (0) target = $region9
  $region8: #{_residual_add.1} parent=0 // pred_region
    _
  $region9: #{_residual_add.1} parent=0 // pred_fallthru
    _
  %v11 = vld [vmem:[%s0] sm:$0xff]
  %v12 = vld [vmem:[%s0 + $0x8] sm:$0xff]
  %v13 = vld [vmem:[%s0 + $0x10] sm:$0xff]
  %v14 = vld [vmem:[%s0 + $0x18] sm:$0xff]
  %v15 = vld [vmem:[%s0 + $0x20] sm:$0xff]
  %v16 = vld [vmem:[%s0 + $0x28] sm:$0xff]
  %v17 = vld [vmem:[%s0 + $0x30] sm:$0xff]
  %v18 = vld [vmem:[%s0 + $0x38] sm:$0xff]
  %v19 = vld [vmem:[%s0 + $0x40] sm:$0xff]
  %v20 = vld [vmem:[%s0 + $0x48] sm:$0xff]
  %v21 = vld [vmem:[%s0 + $0x50] sm:$0xff]
  %v22 = vld [vmem:[%s0 + $0x58] sm:$0xff]
  %v23 = vld [vmem:[%s0 + $0x60] sm:$0xff]
  %v24 = vld [vmem:[%s0 + $0x68] sm:$0xff]
  %v25 = vld [vmem:[%s0 + $0x70] sm:$0xff]
  %v26 = vld [vmem:[%s0 + $0x78] sm:$0xff]
  %v27 = vld [vmem:[%s0 + $0x80] sm:$0xff]
  %v28 = vld [vmem:[%s0 + $0x88] sm:$0xff]
  %v29 = vld [vmem:[%s0 + $0x90] sm:$0x7]
  %v30 = vld [vmem:[%s1] sm:$0xff]
  %v31 = vld [vmem:[%s1 + $0x8] sm:$0xff]
  %v32 = vld [vmem:[%s1 + $0x10] sm:$0xff]
  %v33 = vld [vmem:[%s1 + $0x18] sm:$0xff]
  %v34 = vld [vmem:[%s1 + $0x20] sm:$0xff]
  %v35 = vld [vmem:[%s1 + $0x28] sm:$0xff]
  %v36 = vld [vmem:[%s1 + $0x30] sm:$0xff]
  %v37 = vld [vmem:[%s1 + $0x38] sm:$0xff]
  %v38 = vld [vmem:[%s1 + $0x40] sm:$0xff]
  %v39 = vld [vmem:[%s1 + $0x48] sm:$0xff]
  %v40 = vld [vmem:[%s1 + $0x50] sm:$0xff]
  %v41 = vld [vmem:[%s1 + $0x58] sm:$0xff]
  %v42 = vld [vmem:[%s1 + $0x60] sm:$0xff]
  %v43 = vld [vmem:[%s1 + $0x68] sm:$0xff]
  %v44 = vld [vmem:[%s1 + $0x70] sm:$0xff]
  %v45 = vld [vmem:[%s1 + $0x78] sm:$0xff]
  %v46 = vld [vmem:[%s1 + $0x80] sm:$0xff]
  %v47 = vld [vmem:[%s1 + $0x88] sm:$0xff]
  %v48 = vld [vmem:[%s1 + $0x90] sm:$0x7]
  %v49 = vadd.f32 %v11, %v30
  %v50 = vadd.f32 %v12, %v31
  %v51 = vadd.f32 %v13, %v32
  %v52 = vadd.f32 %v14, %v33
  %v53 = vadd.f32 %v15, %v34
  %v54 = vadd.f32 %v16, %v35
  %v55 = vadd.f32 %v17, %v36
  %v56 = vadd.f32 %v18, %v37
  %v57 = vadd.f32 %v19, %v38
  %v58 = vadd.f32 %v20, %v39
  %v59 = vadd.f32 %v21, %v40
  %v60 = vadd.f32 %v22, %v41
  %v61 = vadd.f32 %v23, %v42
  %v62 = vadd.f32 %v24, %v43
  %v63 = vadd.f32 %v25, %v44
  %v64 = vadd.f32 %v26, %v45
  %v65 = vadd.f32 %v27, %v46
  %v66 = vadd.f32 %v28, %v47
  %v67 = vadd.f32 %v29, %v48
  %68 = vst [vmem:[%s2] sm:$0xff] %v49
  %69 = vst [vmem:[%s2 + $0x8] sm:$0xff] %v50
  %70 = vst [vmem:[%s2 + $0x10] sm:$0xff] %v51
  %71 = vst [vmem:[%s2 + $0x18] sm:$0xff] %v52
  %72 = vst [vmem:[%s2 + $0x20] sm:$0xff] %v53
  %73 = vst [vmem:[%s2 + $0x28] sm:$0xff] %v54
  %74 = vst [vmem:[%s2 + $0x30] sm:$0xff] %v55
  %75 = vst [vmem:[%s2 + $0x38] sm:$0xff] %v56
  %76 = vst [vmem:[%s2 + $0x40] sm:$0xff] %v57
  %77 = vst [vmem:[%s2 + $0x48] sm:$0xff] %v58
  %78 = vst [vmem:[%s2 + $0x50] sm:$0xff] %v59
  %79 = vst [vmem:[%s2 + $0x58] sm:$0xff] %v60
  %80 = vst [vmem:[%s2 + $0x60] sm:$0xff] %v61
  %81 = vst [vmem:[%s2 + $0x68] sm:$0xff] %v62
  %82 = vst [vmem:[%s2 + $0x70] sm:$0xff] %v63
  %83 = vst [vmem:[%s2 + $0x78] sm:$0xff] %v64
  %84 = vst [vmem:[%s2 + $0x80] sm:$0xff] %v65
  %85 = vst [vmem:[%s2 + $0x88] sm:$0xff] %v66
  %86 = vst [vmem:[%s2 + $0x90] sm:$0x7] %v67
  // Predicated region
  $region10: #{_residual_add.1} parent=0 // pred_check
    _
  $region11: #{_residual_add.1} parent=0 // pred_check_branch
    %88 = sbr.rel (0) target = $region13
  $region12: #{_residual_add.1} parent=0 // pred_region
    _
  $region13: #{_residual_add.1} parent=0 // pred_fallthru
    _
  // Predicated region
  $region14: #{_residual_add.1} parent=0 // pred_check
    _
  $region15: #{_residual_add.1} parent=0 // pred_check_branch
    %90 = sbr.rel (0) target = $region17
  $region16: #{_residual_add.1} parent=0 // pred_region
    _
  $region17: #{_residual_add.1} parent=0 // pred_fallthru
    _

</llo_original>
